<compile_context>
chip_gen: v7x
topology: tpu7x:2x2x1
jax: 0.10.0
libtpu: 0.0.40
codegen_flags: <defaults>
</compile_context>

<pallas_src>
import jax
import jax.numpy as jnp
from jax import lax
from jax.experimental import pallas as pl
from jax.experimental.pallas import tpu as pltpu


# ----------------------------------------------------------------------------
# One-time weight preparation (hoisted out of the per-call hot path).
# ----------------------------------------------------------------------------
def fuse_lstm_weights(W_fg, W_ig, W_og, W_ol, hidden_size):
    """PyTorch-layout (H, H+I) gate weights -> fused (H,4H) and (I,4H) blocks.

    Fused gate-column order: [forget | input | candidate | output], matching
    the static slicing inside the kernels.
    """
    H = hidden_size
    w_all = jnp.concatenate([W_fg.T, W_ig.T, W_og.T, W_ol.T], axis=1)  # (H+I, 4H)
    w_h = w_all[:H, :]   # rows multiplying prev_h  (H, 4H)
    w_x = w_all[H:, :]   # rows multiplying x       (I, 4H)
    return w_h, w_x


# ----------------------------------------------------------------------------
# Shared gate math (f32, parity with the reference module).
# ----------------------------------------------------------------------------
def _apply_gates(gates_f32, c_f32, H):
    sg = jax.nn.sigmoid(gates_f32)          # all four gates use sigmoid here
    ft = sg[:, 0 * H:1 * H]
    it = sg[:, 1 * H:2 * H]
    ctt = sg[:, 2 * H:3 * H]
    ot = sg[:, 3 * H:4 * H]
    ct = ft * c_f32 + it * ctt
    ht = ot * jnp.tanh(ct)
    return ht, ct


# ----------------------------------------------------------------------------
# Single-step kernel (module-parity forward): one fused MXU matmul + gating.
# ----------------------------------------------------------------------------
def _lstm_cell_kernel(h_ref, x_ref, c_ref, wh_ref, wx_ref, ht_ref, ct_ref):
    h = h_ref[...].astype(jnp.float32)              # (B, H)
    x = x_ref[...].astype(jnp.float32)              # (B, I)
    c = c_ref[...].astype(jnp.float32)              # (B, H)
    H = c.shape[-1]

    # Fused gate pre-activations: (B, 4H) -> lane-dense MXU output (4H = 128).
    gates = (jnp.dot(h, wh_ref[...], preferred_element_type=jnp.float32)
             + jnp.dot(x, wx_ref[...], preferred_element_type=jnp.float32))
    ht, ct = _apply_gates(gates, c, H)

    ht_ref[...] = ht.astype(ht_ref.dtype)
    ct_ref[...] = ct.astype(ct_ref.dtype)


def lstm_cell_forward(x, prev_state, c_state, w_h, w_x):
    """Pallas-backed LSTMCell.forward (single step).  Returns (ht, ct)."""
    B = x.shape[0]
    H = w_h.shape[0]

    prev_h = jnp.zeros((B, H), dtype=x.dtype) if prev_state is None else prev_state
    c_st = jnp.zeros((B, H), dtype=x.dtype) if c_state is None else c_state

    vmem = pl.BlockSpec(memory_space=pltpu.MemorySpace.VMEM)
    ht, ct = pl.pallas_call(
        _lstm_cell_kernel,
        out_shape=(jax.ShapeDtypeStruct((B, H), x.dtype),
                   jax.ShapeDtypeStruct((B, H), x.dtype)),
        in_specs=[vmem, vmem, vmem, vmem, vmem],
        out_specs=(vmem, vmem),
    )(prev_h, x, c_st, w_h, w_x)
    return ht, ct


# ----------------------------------------------------------------------------
# Input projection: xproj = x_flat @ w_x, one lane-dense matmul outside the
# recurrence (no serial dependency).  T*B rows actually fill the MXU height.
# ----------------------------------------------------------------------------
def _proj_kernel(x_ref, w_ref, o_ref):
    o_ref[...] = jnp.dot(x_ref[...].astype(jnp.float32), w_ref[...],
                         preferred_element_type=jnp.float32).astype(o_ref.dtype)


def _input_projection(x_flat, w_x):
    # Small shapes: whole operands VMEM-resident, single call.
    # TODO(synk): for very long sequences, grid the row dimension of x_flat.
    N = x_flat.shape[0]
    G = w_x.shape[1]
    vmem = pl.BlockSpec(memory_space=pltpu.MemorySpace.VMEM)
    return pl.pallas_call(
        _proj_kernel,
        out_shape=jax.ShapeDtypeStruct((N, G), jnp.float32),
        in_specs=[vmem, vmem],
        out_specs=vmem,
    )(x_flat, w_x)


# ----------------------------------------------------------------------------
# Sequence kernel: time loop INSIDE the kernel, recurrent weights resident in
# VMEM, h/c carried in f32 VMEM scratch across chunks.  One grid iteration
# covers `seq_chunk` timesteps, so the ~0.35 us/step grid overhead and the
# per-step writeback DMA are amortized.
# ----------------------------------------------------------------------------
def _lstm_seq_kernel(xproj_ref, h0_ref, c0_ref, wh_ref,
                     h_seq_ref, c_fin_ref, h_scr, c_scr):
    chunk = pl.program_id(0)

    @pl.when(chunk == 0)
    def _():
        h_scr[...] = h0_ref[...].astype(jnp.float32)
        c_scr[...] = c0_ref[...].astype(jnp.float32)

    H = c0_ref.shape[-1]
    TT = xproj_ref.shape[0]          # timesteps in this chunk (static)

    def step(t, carry):
        h = h_scr[...]
        c = c_scr[...]
        # Only the recurrent matmul sits on the serial critical path.
        gates = (jnp.dot(h, wh_ref[...], preferred_element_type=jnp.float32)
                 + xproj_ref[t])
        ht, ct = _apply_gates(gates, c, H)
        h_scr[...] = ht
        c_scr[...] = ct
        h_seq_ref[t] = ht.astype(h_seq_ref.dtype)   # store to resident block
        return carry

    lax.fori_loop(0, TT, step, 0, unroll=True)

    @pl.when(chunk == pl.num_programs(0) - 1)
    def _():
        c_fin_ref[...] = c_scr[...].astype(c_fin_ref.dtype)


def lstm_sequence_forward(x_seq, h0, c0, w_h, w_x, *, seq_chunk=None):
    """Run the cell over a whole sequence.

    x_seq: (T, B, I).  Returns (h_seq (T, B, H), c_final (B, H)).
    """
    T, B, I = x_seq.shape
    H = h0.shape[-1]
    G = 4 * H

    # Hoisted, non-recurrent input projection (one big matmul).
    xproj = _input_projection(x_seq.reshape(T * B, I), w_x).reshape(T, B, G)

    if seq_chunk is None:
        seq_chunk = T if T <= 64 else 32
    assert T % seq_chunk == 0, "seq_chunk must divide T"
    num_chunks = T // seq_chunk

    h_seq, c_fin = pl.pallas_call(
        _lstm_seq_kernel,
        out_shape=(jax.ShapeDtypeStruct((T, B, H), x_seq.dtype),
                   jax.ShapeDtypeStruct((B, H), x_seq.dtype)),
        grid=(num_chunks,),
        in_specs=[
            pl.BlockSpec((seq_chunk, B, G), lambda i: (i, 0, 0)),  # xproj chunk
            pl.BlockSpec((B, H), lambda i: (0, 0)),                # h0 (resident)
            pl.BlockSpec((B, H), lambda i: (0, 0)),                # c0 (resident)
            pl.BlockSpec((H, G), lambda i: (0, 0)),                # fused W_h (resident)
        ],
        out_specs=(pl.BlockSpec((seq_chunk, B, H), lambda i: (i, 0, 0)),
                   pl.BlockSpec((B, H), lambda i: (0, 0))),
        scratch_shapes=[pltpu.VMEM((B, H), jnp.float32),           # h carry
                        pltpu.VMEM((B, H), jnp.float32)],          # c carry
        compiler_params=pltpu.CompilerParams(
            dimension_semantics=("arbitrary",)),                   # sequential recurrence
    )(xproj, h0, c0, w_h)
    return h_seq, c_fin


# ----------------------------------------------------------------------------
# Pure-JAX reference (mirrors the PyTorch module exactly).
# ----------------------------------------------------------------------------
def _reference_step(x, prev_h, c_st, W_fg, W_ig, W_og, W_ol):
    concat_hx = jnp.concatenate((prev_h, x), axis=1)
    ft = jax.nn.sigmoid(concat_hx @ W_fg.T)
    it = jax.nn.sigmoid(concat_hx @ W_ig.T)
    ct_t = jax.nn.sigmoid(concat_hx @ W_og.T)
    ct = ft * c_st + it * ct_t
    ot = jax.nn.sigmoid(concat_hx @ W_ol.T)
    ht = ot * jnp.tanh(ct)
    return ht, ct


if __name__ == "__main__":
    input_size = 16
    hidden_size = 32
    batch = 8
    seq_len = 8

    key = jax.random.PRNGKey(0)
    kx, kh, kc, kf, ki, ko, kl, ks = jax.random.split(key, 8)

    # Deterministic param init mirroring reset_parameters(): U(-sqrt_k, sqrt_k)
    sqrt_k = (1.0 / hidden_size) ** 0.5
    wshape = (hidden_size, hidden_size + input_size)
    W_fg = jax.random.uniform(kf, wshape, jnp.float32, -sqrt_k, sqrt_k)
    W_ig = jax.random.uniform(ki, wshape, jnp.float32, -sqrt_k, sqrt_k)
    W_og = jax.random.uniform(ko, wshape, jnp.float32, -sqrt_k, sqrt_k)
    W_ol = jax.random.uniform(kl, wshape, jnp.float32, -sqrt_k, sqrt_k)

    # One-time weight fusion (outside the per-call hot path).
    w_h, w_x = fuse_lstm_weights(W_fg, W_ig, W_og, W_ol, hidden_size)
    w_h, w_x = jax.block_until_ready((w_h, w_x))

    x = jax.random.normal(kx, (batch, input_size), jnp.float32)
    prev_h = jax.random.normal(kh, (batch, hidden_size), jnp.float32)
    c_st = jax.random.normal(kc, (batch, hidden_size), jnp.float32)

    # ---- single-step cell (module-parity forward) ----
    ht, ct = lstm_cell_forward(x, prev_h, c_st, w_h, w_x)
    ht, ct = jax.block_until_ready((ht, ct))

    ref_h, ref_c = _reference_step(x, prev_h, c_st, W_fg, W_ig, W_og, W_ol)
    assert ht.shape == (batch, hidden_size)
    assert jnp.allclose(ht, ref_h, atol=1e-5, rtol=1e-5), "ht mismatch vs reference"
    assert jnp.allclose(ct, ref_c, atol=1e-5, rtol=1e-5), "ct mismatch vs reference"

    # ---- full sequence (time loop inside one grid step, hoisted x projection) ----
    x_seq = jax.random.normal(ks, (seq_len, batch, input_size), jnp.float32)
    h_seq, c_fin = lstm_sequence_forward(x_seq, prev_h, c_st, w_h, w_x)
    h_seq, c_fin = jax.block_until_ready((h_seq, c_fin))

    rh, rc = prev_h, c_st
    for t in range(seq_len):
        rh, rc = _reference_step(x_seq[t], rh, rc, W_fg, W_ig, W_og, W_ol)
        assert jnp.allclose(h_seq[t], rh, atol=1e-4, rtol=1e-4), (
            f"sequence h mismatch at step {t}")
    assert jnp.allclose(c_fin, rc, atol=1e-4, rtol=1e-4), "final c mismatch"

    print("KERNEL_OK")
</pallas_src>

<mosaic_0001>
module attributes {stable_mosaic.version = 11 : i64} {
  func.func @_lstm_cell_kernel(%arg0: memref<8x32xf32, #tpu.memory_space<vmem>>, %arg1: memref<8x16xf32, #tpu.memory_space<vmem>>, %arg2: memref<8x32xf32, #tpu.memory_space<vmem>>, %arg3: memref<32x128xf32, #tpu.memory_space<vmem>>, %arg4: memref<16x128xf32, #tpu.memory_space<vmem>>, %arg5: memref<8x32xf32, #tpu.memory_space<vmem>>, %arg6: memref<8x32xf32, #tpu.memory_space<vmem>>) attributes {dimension_semantics = [], scalar_prefetch = 0 : i64, scratch_operands = 0 : i64, tpu.core_type = #tpu.core_type<tc>} {
    %c0 = arith.constant 0 : index
    %c0_0 = arith.constant 0 : index
    %0 = vector.load %arg0[%c0, %c0_0] : memref<8x32xf32, #tpu.memory_space<vmem>>, vector<8x32xf32>
    %c0_1 = arith.constant 0 : index
    %c0_2 = arith.constant 0 : index
    %1 = vector.load %arg1[%c0_1, %c0_2] : memref<8x16xf32, #tpu.memory_space<vmem>>, vector<8x16xf32>
    %c0_3 = arith.constant 0 : index
    %c0_4 = arith.constant 0 : index
    %2 = vector.load %arg2[%c0_3, %c0_4] : memref<8x32xf32, #tpu.memory_space<vmem>>, vector<8x32xf32>
    %c0_5 = arith.constant 0 : index
    %c0_6 = arith.constant 0 : index
    %3 = vector.load %arg3[%c0_5, %c0_6] : memref<32x128xf32, #tpu.memory_space<vmem>>, vector<32x128xf32>
    %cst = arith.constant dense<0.000000e+00> : vector<8x128xf32>
    %4 = tpu.matmul %0, %3, %cst {dimension_numbers = #tpu.dot_dimension_numbers<[1], [0], [0], [1], [0, 0, 1, 1], [], []>} : vector<8x32xf32>, vector<32x128xf32>, vector<8x128xf32> -> vector<8x128xf32>
    %c0_7 = arith.constant 0 : index
    %c0_8 = arith.constant 0 : index
    %5 = vector.load %arg4[%c0_7, %c0_8] : memref<16x128xf32, #tpu.memory_space<vmem>>, vector<16x128xf32>
    %cst_9 = arith.constant dense<0.000000e+00> : vector<8x128xf32>
    %6 = tpu.matmul %1, %5, %cst_9 {dimension_numbers = #tpu.dot_dimension_numbers<[1], [0], [0], [1], [0, 0, 1, 1], [], []>} : vector<8x16xf32>, vector<16x128xf32>, vector<8x128xf32> -> vector<8x128xf32>
    %7 = arith.addf %4, %6 : vector<8x128xf32>
    %8 = arith.negf %7 : vector<8x128xf32>
    %9 = math.exp %8 : vector<8x128xf32>
    %cst_10 = arith.constant 1.000000e+00 : f32
    %10 = vector.broadcast %cst_10 : f32 to vector<8x128xf32>
    %11 = arith.addf %10, %9 : vector<8x128xf32>
    %12 = arith.divf %10, %11 : vector<8x128xf32>
    %13 = vector.extract_strided_slice %12 {offsets = [0, 0], sizes = [8, 32], strides = [1, 1]} : vector<8x128xf32> to vector<8x32xf32>
    %14 = vector.extract_strided_slice %12 {offsets = [0, 32], sizes = [8, 32], strides = [1, 1]} : vector<8x128xf32> to vector<8x32xf32>
    %15 = vector.extract_strided_slice %12 {offsets = [0, 64], sizes = [8, 32], strides = [1, 1]} : vector<8x128xf32> to vector<8x32xf32>
    %16 = vector.extract_strided_slice %12 {offsets = [0, 96], sizes = [8, 32], strides = [1, 1]} : vector<8x128xf32> to vector<8x32xf32>
    %17 = arith.mulf %13, %2 : vector<8x32xf32>
    %18 = arith.mulf %14, %15 : vector<8x32xf32>
    %19 = arith.addf %17, %18 : vector<8x32xf32>
    %20 = math.tanh %19 : vector<8x32xf32>
    %21 = arith.mulf %16, %20 : vector<8x32xf32>
    %c0_11 = arith.constant 0 : index
    %c0_12 = arith.constant 0 : index
    %22 = vector.load %arg5[%c0_11, %c0_12] : memref<8x32xf32, #tpu.memory_space<vmem>>, vector<8x32xf32>
    tpu.vector_store %arg5[%c0_11, %c0_12], %21 {strides = array<i32>} : memref<8x32xf32, #tpu.memory_space<vmem>>, vector<8x32xf32>,
    %c0_13 = arith.constant 0 : index
    %c0_14 = arith.constant 0 : index
    %23 = vector.load %arg6[%c0_13, %c0_14] : memref<8x32xf32, #tpu.memory_space<vmem>>, vector<8x32xf32>
    tpu.vector_store %arg6[%c0_13, %c0_14], %19 {strides = array<i32>} : memref<8x32xf32, #tpu.memory_space<vmem>>, vector<8x32xf32>,
    return
  }
}

</mosaic_0001>

<llo_original>
// kernel: tpu_custom_call.1
$region0: #{tpu_custom_call.1}
  #allocation0 [shape = 'u32[]', space=smem, size = 0x4, offset = 0x4, fixed_abs, tag = 'smem constant byte address 0x4 - core index']
  #allocation1 [shape = 'u32[144,128]{1,0:T(1,128)}', space=vmem, size = 0x12000, scoped, tag = 'internal scratch']
  %s0 = inlined_call_operand.hbm [shape: f32[8,32], index: 0, kind: input, shape index: {}]
  %s1 = inlined_call_operand.hbm [shape: f32[8,16], index: 1, kind: input, shape index: {}]
  %s2 = inlined_call_operand.hbm [shape: f32[8,32], index: 2, kind: input, shape index: {}]
  %s3 = inlined_call_operand.hbm [shape: f32[32,128], index: 3, kind: input, shape index: {}]
  %s4 = inlined_call_operand.hbm [shape: f32[16,128], index: 4, kind: input, shape index: {}]
  %s5 = inlined_call_operand.hbm [shape: f32[8,32], index: 5, kind: output, shape index: {0}]
  %s6 = inlined_call_operand.hbm [shape: f32[8,32], index: 6, kind: output, shape index: {1}]
  %7 = xla_tuple %s5, %s6
  %s8 = sld [smem:[#allocation0]]
  $region58: #{tpu_custom_call.1} parent=0
    _
  %s10 = ssub.s32 1, %s8
  %s11 = scalar_select 0, %s10, %s8
  $region1: #{tpu_custom_call.1} parent=0
    #allocation2 [shape = 'u8[4096]{0}', space=vmem, size = 0x1000, scoped, tag = 'input window, operand 0, single buffered']
    #allocation3 [shape = 's32[1]{0}', space=sflag, size = 0x4, scoped, tag = 'scoped memory for tpu_custom_call.1']
    #allocation4 [shape = 's32[1]{0}', space=sflag, size = 0x4, scoped, tag = 'scoped memory for tpu_custom_call.1']
    #allocation5 [shape = 'u8[4096]{0}', space=vmem, size = 0x1000, scoped, tag = 'input window, operand 1, single buffered']
    #allocation6 [shape = 's32[1]{0}', space=sflag, size = 0x4, scoped, tag = 'scoped memory for tpu_custom_call.1']
    #allocation7 [shape = 'u8[4096]{0}', space=vmem, size = 0x1000, scoped, tag = 'input window, operand 2, single buffered']
    #allocation8 [shape = 'u8[16384]{0}', space=vmem, size = 0x4000, scoped, tag = 'input window, operand 3, single buffered']
    #allocation9 [shape = 's32[1]{0}', space=sflag, size = 0x4, scoped, tag = 'scoped memory for tpu_custom_call.1']
    #allocation10 [shape = 'u8[8192]{0}', space=vmem, size = 0x2000, scoped, tag = 'input window, operand 4, single buffered']
    #allocation11 [shape = 'u8[4096]{0}', space=vmem, size = 0x1000, scoped, tag = 'output window, operand 0, single buffered']
    #allocation12 [shape = 'u8[4096]{0}', space=vmem, size = 0x1000, scoped, tag = 'output window, operand 1, single buffered']
    #allocation13 [shape = 's32[1]{0}', space=sflag, size = 0x4, scoped, tag = 'scoped memory for tpu_custom_call.1']
    %12 = vsyncpa [#allocation3], 0
    %13 = vsyncpa [#allocation6], 0
    %14 = vsyncpa [#allocation9], 0
    %15 = vsyncpa [#allocation4], 0
    %16 = vsyncpa [#allocation13], 0
    // Predicated region
    $region2: #{tpu_custom_call.1} parent=1 // pred_check
      _
    $region3: #{tpu_custom_call.1} parent=1 // pred_check_branch
      %18 = sbr.rel (0) target = $region5
    $region4: #{tpu_custom_call.1} parent=1 // pred_region
      %s20 = ssub.s32 128, 128
      %21 = vsyncadd [#allocation3], %s20
      %s23 = sshll.u32 [#allocation2], 4
      %s24 = int_to_ptr.vmem [resolvable:$true] %s23
      %26 = dma.hbm_to_vmem [thread:$0]  %s0, 128, %s24, [#allocation3]
    $region5: #{tpu_custom_call.1} parent=1 // pred_fallthru
      _
    // Predicated region
    $region6: #{tpu_custom_call.1} parent=1 // pred_check
      _
    $region7: #{tpu_custom_call.1} parent=1 // pred_check_branch
      %28 = sbr.rel (0) target = $region9
    $region8: #{tpu_custom_call.1} parent=1 // pred_region
      %s30 = ssub.s32 128, 128
      %31 = vsyncadd [#allocation6], %s30
      %s33 = sshll.u32 [#allocation5], 4
      %s34 = int_to_ptr.vmem [resolvable:$true] %s33
      %36 = dma.hbm_to_vmem [thread:$0]  %s1, 128, %s34, [#allocation6]
    $region9: #{tpu_custom_call.1} parent=1 // pred_fallthru
      _
    // Predicated region
    $region10: #{tpu_custom_call.1} parent=1 // pred_check
      _
    $region11: #{tpu_custom_call.1} parent=1 // pred_check_branch
      %38 = sbr.rel (0) target = $region13
    $region12: #{tpu_custom_call.1} parent=1 // pred_region
      %s40 = ssub.s32 128, 128
      %41 = vsyncadd [#allocation6], %s40
      %s43 = sshll.u32 [#allocation7], 4
      %s44 = int_to_ptr.vmem [resolvable:$true] %s43
      %46 = dma.hbm_to_vmem [thread:$0]  %s2, 128, %s44, [#allocation6]
    $region13: #{tpu_custom_call.1} parent=1 // pred_fallthru
      _
    // Predicated region
    $region14: #{tpu_custom_call.1} parent=1 // pred_check
      _
    $region15: #{tpu_custom_call.1} parent=1 // pred_check_branch
      %48 = sbr.rel (0) target = $region17
    $region16: #{tpu_custom_call.1} parent=1 // pred_region
      %s50 = ssub.s32 512, 512
      %51 = vsyncadd [#allocation9], %s50
      %s52 = sshll.u32 [#allocation8], 4
      %s53 = int_to_ptr.vmem [resolvable:$true] %s52
      %58 = dma.hbm_to_vmem [thread:$0]  %s3, 512, %s53, [#allocation9], 128, 128, 8
    $region17: #{tpu_custom_call.1} parent=1 // pred_fallthru
      _
    // Predicated region
    $region18: #{tpu_custom_call.1} parent=1 // pred_check
      _
    $region19: #{tpu_custom_call.1} parent=1 // pred_check_branch
      %60 = sbr.rel (0) target = $region21
    $region20: #{tpu_custom_call.1} parent=1 // pred_region
      %s62 = ssub.s32 256, 256
      %63 = vsyncadd [#allocation9], %s62
      %s64 = sshll.u32 [#allocation10], 4
      %s65 = int_to_ptr.vmem [resolvable:$true] %s64
      %70 = dma.hbm_to_vmem [thread:$0]  %s4, 256, %s65, [#allocation9], 128, 128, 8
    $region21: #{tpu_custom_call.1} parent=1 // pred_fallthru
      _
    // Predicated region
    $region22: #{tpu_custom_call.1} parent=1 // pred_check
      _
    $region23: #{tpu_custom_call.1} parent=1 // pred_check_branch
      %72 = sbr.rel (0) target = $region25
    $region24: #{tpu_custom_call.1} parent=1 // pred_region
      %73 = dma.done [#allocation3], 128
    $region25: #{tpu_custom_call.1} parent=1 // pred_fallthru
      _
    // Predicated region
    $region26: #{tpu_custom_call.1} parent=1 // pred_check
      _
    $region27: #{tpu_custom_call.1} parent=1 // pred_check_branch
      %75 = sbr.rel (0) target = $region29
    $region28: #{tpu_custom_call.1} parent=1 // pred_region
      %76 = dma.done [#allocation6], 128
    $region29: #{tpu_custom_call.1} parent=1 // pred_fallthru
      _
    // Predicated region
    $region30: #{tpu_custom_call.1} parent=1 // pred_check
      _
    $region31: #{tpu_custom_call.1} parent=1 // pred_check_branch
      %78 = sbr.rel (0) target = $region33
    $region32: #{tpu_custom_call.1} parent=1 // pred_region
      %79 = dma.done [#allocation6], 128
    $region33: #{tpu_custom_call.1} parent=1 // pred_fallthru
      _
    // Predicated region
    $region34: #{tpu_custom_call.1} parent=1 // pred_check
      _
    $region35: #{tpu_custom_call.1} parent=1 // pred_check_branch
      %81 = sbr.rel (0) target = $region37
    $region36: #{tpu_custom_call.1} parent=1 // pred_region
      %82 = dma.done [#allocation9], 512
    $region37: #{tpu_custom_call.1} parent=1 // pred_fallthru
      _
    // Predicated region
    $region38: #{tpu_custom_call.1} parent=1 // pred_check
      _
    $region39: #{tpu_custom_call.1} parent=1 // pred_check_branch
      %84 = sbr.rel (0) target = $region41
    $region40: #{tpu_custom_call.1} parent=1 // pred_region
      %85 = dma.done [#allocation9], 256
    $region41: #{tpu_custom_call.1} parent=1 // pred_fallthru
      _
    %v86 = vld [vmem:[#allocation2] sm:$0xff]
    %v87 = vld [vmem:[#allocation5] sm:$0xff]
    %v88 = vld [vmem:[#allocation7] sm:$0xff]
    %v89 = vld [vmem:[#allocation8] sm:$0xff]
    %v90 = vld [vmem:[#allocation8 + $0x8] sm:$0xff]
    %v91 = vld [vmem:[#allocation8 + $0x10] sm:$0xff]
    %v92 = vld [vmem:[#allocation8 + $0x18] sm:$0xff]
    %v93 = vld [vmem:[#allocation10] sm:$0xff]
    %v94 = vld [vmem:[#allocation10 + $0x8] sm:$0xff]
    %vm95 = vcmask 130048
    %v97 = vsel %vm95, %v87, 0
    %99 = vmatprep.subr.mxu0 0.0
    %100 = vmatpush1.msra.mxu0 %v93
    %101 = vmatprep.subr.mxu0 0.0
    %102 = vmatpush1.msra.mxu0 %v94
    %103 = vmatprep.subr.mxu0 0.0
    %104 = vmatpush1.msra.mxu0 0.0
    %105 = vmatprep.subr.mxu0 0.0
    %106 = vmatpush1.msra.mxu0 0.0
    %107 = vmatprep.subr.mxu0 0.0
    %108 = vmatpush1.msra.mxu0 0.0
    %109 = vmatprep.subr.mxu0 0.0
    %110 = vmatpush1.msra.mxu0 0.0
    %111 = vmatprep.subr.mxu0 0.0
    %112 = vmatpush1.msra.mxu0 0.0
    %113 = vmatprep.subr.mxu0 0.0
    %114 = vmatpush1.msra.mxu0 0.0
    %115 = vmatprep.subr.mxu0 0.0
    %116 = vmatpush1.msra.mxu0 0.0
    %117 = vmatprep.subr.mxu0 0.0
    %118 = vmatpush1.msra.mxu0 0.0
    %119 = vmatprep.subr.mxu0 0.0
    %120 = vmatpush1.msra.mxu0 0.0
    %121 = vmatprep.subr.mxu0 0.0
    %122 = vmatpush1.msra.mxu0 0.0
    %123 = vmatprep.subr.mxu0 0.0
    %124 = vmatpush1.msra.mxu0 0.0
    %125 = vmatprep.subr.mxu0 0.0
    %126 = vmatpush1.msra.mxu0 0.0
    %127 = vmatprep.subr.mxu0 0.0
    %128 = vmatpush1.msra.mxu0 0.0
    %129 = vmatprep.subr.mxu0 0.0
    %130 = vmatpush1.msra.mxu0 0.0
    %131 = vmatprep.subr.mxu0 0.0
    %132 = vmatpush1.msra.mxu0 0.0
    %133 = vmatprep.subr.mxu0 0.0
    %134 = vmatpush1.msra.mxu0 0.0
    %135 = vmatprep.subr.mxu0 0.0
    %136 = vmatpush1.msra.mxu0 0.0
    %137 = vmatprep.subr.mxu0 0.0
    %138 = vmatpush1.msra.mxu0 0.0
    %139 = vmatprep.subr.mxu0 0.0
    %140 = vmatpush1.msra.mxu0 0.0
    %141 = vmatprep.subr.mxu0 0.0
    %142 = vmatpush1.msra.mxu0 0.0
    %143 = vmatprep.subr.mxu0 0.0
    %144 = vmatpush1.msra.mxu0 0.0
    %145 = vmatprep.subr.mxu0 0.0
    %146 = vmatpush1.msra.mxu0 0.0
    %147 = vmatprep.subr.mxu0 0.0
    %148 = vmatpush1.msra.mxu0 0.0
    %149 = vmatprep.subr.mxu0 0.0
    %150 = vmatpush1.msra.mxu0 0.0
    %151 = vmatprep.subr.mxu0 0.0
    %152 = vmatpush1.msra.mxu0 0.0
    %153 = vmatprep.subr.mxu0 0.0
    %154 = vmatpush1.msra.mxu0 0.0
    %155 = vmatprep.subr.mxu0 0.0
    %156 = vmatpush1.msra.mxu0 0.0
    %157 = vmatprep.subr.mxu0 0.0
    %158 = vmatpush1.msra.mxu0 0.0
    %159 = vmatprep.subr.mxu0 0.0
    %160 = vmatpush1.msra.mxu0 0.0
    %161 = vmatprep.subr.mxu0 0.0
    %162 = vmatpush1.msra.mxu0 0.0
    %163 = vmatprep.mubr.f32.mxu0 0.0
    %164 = vmatmul.mubr.f32.gmra.mrb[0].mxu0 %v97
    %v165 = vpop.f32.mrb[0].mxu0
    %v166 = vadd.f32 0.0, %v165
    %v167 = vpop.f32.mrb[0].mxu0
    %168 = vdwg.mxu0
    %vm169 = vcmask 261120
    %v171 = vsel %vm169, %v86, 0
    %173 = vmatprep.subr.mxu0 0.0
    %174 = vmatpush1.msra.mxu0 %v89
    %175 = vmatprep.subr.mxu0 0.0
    %176 = vmatpush1.msra.mxu0 %v90
    %177 = vmatprep.subr.mxu0 0.0
    %178 = vmatpush1.msra.mxu0 %v91
    %179 = vmatprep.subr.mxu0 0.0
    %180 = vmatpush1.msra.mxu0 %v92
    %181 = vmatprep.subr.mxu0 0.0
    %182 = vmatpush1.msra.mxu0 0.0
    %183 = vmatprep.subr.mxu0 0.0
    %184 = vmatpush1.msra.mxu0 0.0
    %185 = vmatprep.subr.mxu0 0.0
    %186 = vmatpush1.msra.mxu0 0.0
    %187 = vmatprep.subr.mxu0 0.0
    %188 = vmatpush1.msra.mxu0 0.0
    %189 = vmatprep.subr.mxu0 0.0
    %190 = vmatpush1.msra.mxu0 0.0
    %191 = vmatprep.subr.mxu0 0.0
    %192 = vmatpush1.msra.mxu0 0.0
    %193 = vmatprep.subr.mxu0 0.0
    %194 = vmatpush1.msra.mxu0 0.0
    %195 = vmatprep.subr.mxu0 0.0
    %196 = vmatpush1.msra.mxu0 0.0
    %197 = vmatprep.subr.mxu0 0.0
    %198 = vmatpush1.msra.mxu0 0.0
    %199 = vmatprep.subr.mxu0 0.0
    %200 = vmatpush1.msra.mxu0 0.0
    %201 = vmatprep.subr.mxu0 0.0
    %202 = vmatpush1.msra.mxu0 0.0
    %203 = vmatprep.subr.mxu0 0.0
    %204 = vmatpush1.msra.mxu0 0.0
    %205 = vmatprep.subr.mxu0 0.0
    %206 = vmatpush1.msra.mxu0 0.0
    %207 = vmatprep.subr.mxu0 0.0
    %208 = vmatpush1.msra.mxu0 0.0
    %209 = vmatprep.subr.mxu0 0.0
    %210 = vmatpush1.msra.mxu0 0.0
    %211 = vmatprep.subr.mxu0 0.0
    %212 = vmatpush1.msra.mxu0 0.0
    %213 = vmatprep.subr.mxu0 0.0
    %214 = vmatpush1.msra.mxu0 0.0
    %215 = vmatprep.subr.mxu0 0.0
    %216 = vmatpush1.msra.mxu0 0.0
    %217 = vmatprep.subr.mxu0 0.0
    %218 = vmatpush1.msra.mxu0 0.0
    %219 = vmatprep.subr.mxu0 0.0
    %220 = vmatpush1.msra.mxu0 0.0
    %221 = vmatprep.subr.mxu0 0.0
    %222 = vmatpush1.msra.mxu0 0.0
    %223 = vmatprep.subr.mxu0 0.0
    %224 = vmatpush1.msra.mxu0 0.0
    %225 = vmatprep.subr.mxu0 0.0
    %226 = vmatpush1.msra.mxu0 0.0
    %227 = vmatprep.subr.mxu0 0.0
    %228 = vmatpush1.msra.mxu0 0.0
    %229 = vmatprep.subr.mxu0 0.0
    %230 = vmatpush1.msra.mxu0 0.0
    %231 = vmatprep.subr.mxu0 0.0
    %232 = vmatpush1.msra.mxu0 0.0
    %233 = vmatprep.subr.mxu0 0.0
    %234 = vmatpush1.msra.mxu0 0.0
    %235 = vmatprep.subr.mxu0 0.0
    %236 = vmatpush1.msra.mxu0 0.0
    %237 = vmatprep.mubr.f32.mxu0 0.0
    %238 = vmatmul.mubr.f32.gmra.mrb[0].mxu0 %v171
    %v239 = vpop.f32.mrb[0].mxu0
    %v240 = vadd.f32 %v166, %v239
    %v241 = vpop.f32.mrb[0].mxu0
    %242 = vdwg.mxu0
    %v243 = vxor.u32 %v240, 2147483648
    %v244 = vmul.f32 %v243, 1.442695
    %v245 = vpow.pop %v244
    %v246 = vadd.f32 %v245, 1.0
    %v247 = vrcp.pop %v246
    %v248 = vmul.f32 1.0, %v247
    %v249 = vmul.f32 %v248, %v88
    %251 = vrot.lane.b32.xlu0 %v248, 96
    %v252 = vpop.permute.xlu0 %251
    %v254 = vmul.f32 %v248, %v252
    %256 = vrot.lane.b32.xlu0 %v254, 96
    %v257 = vpop.permute.xlu0 %256
    %v259 = vadd.f32 %v249, %v257
    %v260 = vtanh.pop %v259
    %262 = vrot.lane.b32.xlu0 %v260, 96
    %v263 = vpop.permute.xlu0 %262
    %v265 = vmul.f32 %v248, %v263
    %267 = vrot.lane.b32.xlu0 %v265, 32
    %v268 = vpop.permute.xlu0 %267
    %270 = vst.msk [vmem:[#allocation11] sm:$0xff] %vm169, %v268
    %271 = vst.msk [vmem:[#allocation12] sm:$0xff] %vm169, %v259
    // Predicated region
    $region42: #{tpu_custom_call.1} parent=1 // pred_check
      _
    $region43: #{tpu_custom_call.1} parent=1 // pred_check_branch
      %273 = sbr.rel (0) target = $region45
    $region44: #{tpu_custom_call.1} parent=1 // pred_region
      %s275 = ssub.s32 128, 128
      %276 = vsyncadd [#allocation4], %s275
      %s278 = sshll.u32 [#allocation11], 4
      %s279 = int_to_ptr.vmem [resolvable:$true] %s278
      %281 = dma.vmem_to_hbm [thread:$0]  %s279, 128, %s5, [#allocation4]
    $region45: #{tpu_custom_call.1} parent=1 // pred_fallthru
      _
    // Predicated region
    $region46: #{tpu_custom_call.1} parent=1 // pred_check
      _
    $region47: #{tpu_custom_call.1} parent=1 // pred_check_branch
      %283 = sbr.rel (0) target = $region49
    $region48: #{tpu_custom_call.1} parent=1 // pred_region
      %s285 = ssub.s32 128, 128
      %286 = vsyncadd [#allocation13], %s285
      %s288 = sshll.u32 [#allocation12], 4
      %s289 = int_to_ptr.vmem [resolvable:$true] %s288
      %291 = dma.vmem_to_hbm [thread:$0]  %s289, 128, %s6, [#allocation13]
    $region49: #{tpu_custom_call.1} parent=1 // pred_fallthru
      _
    // Predicated region
    $region50: #{tpu_custom_call.1} parent=1 // pred_check
      _
    $region51: #{tpu_custom_call.1} parent=1 // pred_check_branch
      %293 = sbr.rel (0) target = $region53
    $region52: #{tpu_custom_call.1} parent=1 // pred_region
      %294 = dma.done [#allocation4], 128
    $region53: #{tpu_custom_call.1} parent=1 // pred_fallthru
      _
    // Predicated region
    $region54: #{tpu_custom_call.1} parent=1 // pred_check
      _
    $region55: #{tpu_custom_call.1} parent=1 // pred_check_branch
      %296 = sbr.rel (0) target = $region57
    $region56: #{tpu_custom_call.1} parent=1 // pred_region
      %297 = dma.done [#allocation13], 128
    $region57: #{tpu_custom_call.1} parent=1 // pred_fallthru
      _
    %298 = vsyncpa [#allocation3], 1
    %299 = vsyncpa [#allocation6], 1
    %300 = vsyncpa [#allocation9], 1
    %301 = vsyncpa [#allocation4], 1
    %302 = vsyncpa [#allocation13], 1

</llo_original>
